<compile_context>
chip_gen: v6e
topology: v6e:2x2x1
jax: 0.10.0
libtpu: 0.0.40
codegen_flags: <defaults>
</compile_context>

<pallas_src>
import math

import jax
import jax.numpy as jnp
from jax.experimental import pallas as pl
from jax.experimental.pallas import tpu as pltpu

# Problem sizes consistent with the module's constructor:
#   input_dim=E=32, output_dim=O=48, num_heads=H=4, hidden_dim=HID=64, seq=S=8, batch=B=2
S, B, E, H, HID, O = 8, 2, 32, 4, 64, 48
HD = E // H
T = S * B                      # tokens per call, flattened as (s, b) -> row = s*B + b
EPS = 1e-5                     # PyTorch LayerNorm default
NEG = -1e30

# ----------------------------- parameter-slab layout --------------------------
LANES = 128
R_WQKV = 0                     # (E, 3E)       rows [0, 32)
R_WO = R_WQKV + E              # (E, E)        rows [32, 64)
R_W1P = R_WO + E               # (E, HID+O)    rows [64, 96)
R_W2 = R_W1P + E               # (HID, O)      rows [96, 160)
R_BIAS = R_W2 + HID            # 6 bias/LN rows, padded to 8   rows [160, 168)
R_ONES = R_BIAS + 8            # (H*T, E) block-diag selector  rows [168, 232)
R_MASK = R_ONES + H * T        # (T, H*T) additive batch mask  rows [232, 248)
R_TOTAL = R_MASK + T           # 248 (multiple of 8)


# ----------------------------- kernel helpers (traced inside the kernel) -----

def _erf(x):
    # Abramowitz & Stegun 7.1.26, |err| < 1.5e-7 — only VPU/EUP-supported ops.
    a1, a2, a3, a4, a5, p = (0.254829592, -0.284496736, 1.421413741,
                             -1.453152027, 1.061405429, 0.3275911)
    sgn = jnp.where(x >= 0.0, 1.0, -1.0)
    ax = jnp.abs(x)
    t = 1.0 / (1.0 + p * ax)                               # exact divide (precision)
    poly = ((((a5 * t + a4) * t + a3) * t + a2) * t + a1) * t
    return sgn * (1.0 - poly * jnp.exp(-ax * ax))


def _gelu(x):
    # nn.GELU() default = exact (erf) GELU
    return 0.5 * x * (1.0 + _erf(x * (1.0 / math.sqrt(2.0))))


def _norm(x):
    mu = jnp.mean(x, axis=-1, keepdims=True)
    var = jnp.mean((x - mu) ** 2, axis=-1, keepdims=True)
    return (x - mu) * jax.lax.rsqrt(var + EPS)


# ----------------------------- the Pallas kernel ------------------------------

def transformer_block_kernel(x_ref, slab_ref, out_ref):
    xf = x_ref[...]                                        # (T, E), rows = (s, b)

    # ---- carve the parameter slab (static slices) ----------------------------
    w_qkv = slab_ref[R_WQKV:R_WQKV + E, 0:3 * E]           # (E, 3E), q-scale folded
    w_o = slab_ref[R_WO:R_WO + E, 0:E]                     # (E, E)
    w_1p = slab_ref[R_W1P:R_W1P + E, 0:HID + O]            # (E, HID+O), LN1 folded
    w_2 = slab_ref[R_W2:R_W2 + HID, 0:O]                   # (HID, O)
    b_qkv = slab_ref[R_BIAS + 0:R_BIAS + 1, 0:3 * E]       # (1, 3E)
    b_o = slab_ref[R_BIAS + 1:R_BIAS + 2, 0:E]             # (1, E)
    b_1p = slab_ref[R_BIAS + 2:R_BIAS + 3, 0:HID + O]      # (1, HID+O)
    b_2 = slab_ref[R_BIAS + 3:R_BIAS + 4, 0:O]             # (1, O)
    g_2 = slab_ref[R_BIAS + 4:R_BIAS + 5, 0:O]             # (1, O)
    be_2 = slab_ref[R_BIAS + 5:R_BIAS + 6, 0:O]            # (1, O)
    ones_bd = slab_ref[R_ONES:R_ONES + H * T, 0:E]         # (H*T, E) 0/1 head selector
    mask_b = slab_ref[R_MASK:R_MASK + T, 0:H * T]          # (T, H*T) 0 / -1e30

    # ---- fused QKV in-projection (q-scale folded into weights host-side) ----
    qkv = jnp.dot(xf, w_qkv, preferred_element_type=jnp.float32) + b_qkv
    q = qkv[:, :E]                                         # already scaled
    k = qkv[:, E:2 * E]
    v = qkv[:, 2 * E:]

    # ---- per-head scores for ALL heads in one matmul -------------------------
    #   k_bd[h*T + t, e] = k[t, e] if (e // HD) == h else 0  (block-diag over heads)
    k_bd = jnp.concatenate([k] * H, axis=0) * ones_bd      # (H*T, E), no transpose
    scores = jax.lax.dot_general(q, k_bd, (((1,), (1,)), ((), ())),
                                 preferred_element_type=jnp.float32)  # (T, H*T)
    scores = scores + mask_b                               # cross-batch pairs -> -1e30

    # softmax over keys; one shared per-row shift is exact for every head segment
    scores = scores - jnp.max(scores, axis=-1, keepdims=True)
    p = jnp.exp(scores)                                    # masked entries -> 0

    # ---- attention output + per-(token, head) denominator in ONE matmul ------
    #   v_bd[h*T + t, e]  = v[t, e] if (e // HD) == h else 0
    #   ones_bd gives the per-head softmax denominator through the same matmul.
    v_bd = jnp.concatenate([v] * H, axis=0) * ones_bd      # (H*T, E)
    pv = jnp.dot(p, jnp.concatenate([v_bd, ones_bd], axis=1),
                 preferred_element_type=jnp.float32)       # (T, 2E)
    denom = jnp.maximum(pv[:, E:], 1e-30)                  # guard exp-underflowed head
    out_heads = pv[:, :E] / denom                          # exact divide (precision)

    # out-projection (attention-weight dropout is identity in eval mode)
    attn = jnp.dot(out_heads, w_o, preferred_element_type=jnp.float32) + b_o

    # ---- residual + LayerNorm1 (gamma/beta folded into w_1p/b_1p host-side) --
    y = _norm(xf + attn)

    # ---- merged [FFN-in | projection] matmul, then GELU -> FFN-out ------------
    hp = jnp.dot(y, w_1p, preferred_element_type=jnp.float32) + b_1p   # (T, HID+O)
    h1 = _gelu(hp[:, :HID])
    proj = hp[:, HID:]
    ff = jnp.dot(h1, w_2, preferred_element_type=jnp.float32) + b_2

    # ---- projection(y) + dropout(ff) (identity), then LayerNorm2 --------------
    out_ref[...] = _norm(proj + ff) * g_2 + be_2


# ----------------------------- wrapper ----------------------------------------

def transformer_block(x_sbe, slab):
    """x_sbe: (seq, batch, embed) like the PyTorch module. Returns (seq, batch, out)."""
    xf = x_sbe.reshape(T, E)            # contiguous reshape (bitcast), NOT a transpose
    vmem = pl.BlockSpec(memory_space=pltpu.MemorySpace.VMEM)
    out = pl.pallas_call(
        transformer_block_kernel,
        out_shape=jax.ShapeDtypeStruct((T, O), jnp.float32),
        in_specs=[vmem, vmem],
        out_specs=vmem,
    )(xf, slab)
    return out.reshape(S, B, O)


# ----------------------------- parameters -------------------------------------

def init_params(key):
    """Parameters in PyTorch conventions: Linear weight is (out, in)."""
    ks = jax.random.split(key, 12)

    def w(k, shape, scale=0.05):
        return (scale * jax.random.normal(k, shape)).astype(jnp.float32)

    wq = w(ks[0], (E, E)); wk = w(ks[1], (E, E)); wv = w(ks[2], (E, E))
    bq = w(ks[3], (1, E)); bk = w(ks[4], (1, E)); bv = w(ks[5], (1, E))
    wo = w(ks[6], (E, E)); bo = jnp.zeros((1, E), jnp.float32)
    g1 = jnp.ones((1, E), jnp.float32); be1 = jnp.zeros((1, E), jnp.float32)
    w1 = w(ks[7], (HID, E)); b1 = w(ks[8], (1, HID))
    w2 = w(ks[9], (O, HID)); b2 = w(ks[10], (1, O))
    if E != O:
        wp = w(ks[11], (O, E)); bp = jnp.zeros((1, O), jnp.float32)
    else:  # nn.Identity()
        wp = jnp.eye(E, dtype=jnp.float32); bp = jnp.zeros((1, O), jnp.float32)
    g2 = jnp.ones((1, O), jnp.float32); be2 = jnp.zeros((1, O), jnp.float32)
    return (wq, wk, wv, bq, bk, bv, wo, bo, g1, be1,
            w1, b1, w2, b2, wp, bp, g2, be2)


def prepare_params(p):
    """Host-side fusion into ONE (R_TOTAL, 128) f32 slab:
         * fused (E,3E) QKV weight with 1/sqrt(HD) folded into Q columns,
         * all weights pre-transposed to (K, N),
         * LN1 gamma/beta folded into the merged [w1 | wp] weight/bias
           (valid here because E != O, so every consumer of y is a matmul),
         * precomputed block-diag head selector and additive batch mask."""
    (wq, wk, wv, bq, bk, bv, wo, bo, g1, be1,
     w1, b1, w2, b2, wp, bp, g2, be2) = p
    scale = 1.0 / math.sqrt(HD)

    w_qkv_t = jnp.concatenate([wq * scale, wk, wv], axis=0).T       # (E, 3E)
    b_qkv = jnp.concatenate([bq * scale, bk, bv], axis=1)           # (1, 3E)
    wo_t = wo.T                                                     # (E, E)

    # merged [w1 | wp] in (E, HID+O) layout, LN1 gamma/beta folded in
    w_1p = jnp.concatenate([w1.T, wp.T], axis=1)                    # (E, HID+O)
    b_1p = jnp.concatenate([b1, bp], axis=1)                        # (1, HID+O)
    w_1p_f = g1.reshape(E, 1) * w_1p
    b_1p_f = be1 @ w_1p + b_1p

    w2_t = w2.T                                                     # (HID, O)

    # constant masks (input-independent; built once on host)
    r = jnp.arange(H * T)[:, None] // T
    c = jnp.arange(E)[None, :] // HD
    ones_bd = (r == c).astype(jnp.float32)                          # (H*T, E)
    rq = jnp.arange(T)[:, None] % B
    ct = (jnp.arange(H * T)[None, :] % T) % B
    mask_b = jnp.where(rq == ct, 0.0, NEG).astype(jnp.float32)      # (T, H*T)

    slab = jnp.zeros((R_TOTAL, LANES), jnp.float32)
    slab = slab.at[R_WQKV:R_WQKV + E, 0:3 * E].set(w_qkv_t)
    slab = slab.at[R_WO:R_WO + E, 0:E].set(wo_t)
    slab = slab.at[R_W1P:R_W1P + E, 0:HID + O].set(w_1p_f)
    slab = slab.at[R_W2:R_W2 + HID, 0:O].set(w2_t)
    slab = slab.at[R_BIAS + 0, 0:3 * E].set(b_qkv[0])
    slab = slab.at[R_BIAS + 1, 0:E].set(bo[0])
    slab = slab.at[R_BIAS + 2, 0:HID + O].set(b_1p_f[0])
    slab = slab.at[R_BIAS + 3, 0:O].set(b2[0])
    slab = slab.at[R_BIAS + 4, 0:O].set(g2[0])
    slab = slab.at[R_BIAS + 5, 0:O].set(be2[0])
    slab = slab.at[R_ONES:R_ONES + H * T, 0:E].set(ones_bd)
    slab = slab.at[R_MASK:R_MASK + T, 0:H * T].set(mask_b)
    return slab


# ----------------------------- pure-JAX reference (correctness check) ---------

def reference(x_sbe, params):
    (wq, wk, wv, bq, bk, bv, wo, bo, g1, be1,
     w1, b1, w2, b2, wp, bp, g2, be2) = params
    x = x_sbe.astype(jnp.float32)                            # (S, B, E)

    def lin(v_, w_, b_):
        return jnp.einsum('...e,fe->...f', v_, w_) + b_[0]

    q = lin(x, wq, bq); k = lin(x, wk, bk); v = lin(x, wv, bv)
    qh = q.reshape(S, B, H, HD).transpose(1, 2, 0, 3) / math.sqrt(HD)
    kh = k.reshape(S, B, H, HD).transpose(1, 2, 0, 3)
    vh = v.reshape(S, B, H, HD).transpose(1, 2, 0, 3)
    sc = jnp.einsum('bhsd,bhtd->bhst', qh, kh)
    p = jax.nn.softmax(sc, axis=-1)
    oh = jnp.einsum('bhst,bhtd->bhsd', p, vh)
    attn = oh.transpose(2, 0, 1, 3).reshape(S, B, E)
    attn = lin(attn, wo, bo)

    def ln(v_, g, b):
        mu = jnp.mean(v_, axis=-1, keepdims=True)
        var = jnp.mean((v_ - mu) ** 2, axis=-1, keepdims=True)
        return (v_ - mu) * jax.lax.rsqrt(var + EPS) * g[0] + b[0]

    y = ln(x + attn, g1, be1)
    ff = lin(jax.nn.gelu(lin(y, w1, b1), approximate=False), w2, b2)
    z = ln(lin(y, wp, bp) + ff, g2, be2)
    return z


# ----------------------------- main --------------------------------------------

if __name__ == "__main__":
    key = jax.random.PRNGKey(0)
    kx, kp = jax.random.split(key)
    x = jax.random.normal(kx, (S, B, E), dtype=jnp.float32)   # (seq, batch, embed)
    params = init_params(kp)
    slab = prepare_params(params)

    out = transformer_block(x, slab)
    out = jax.block_until_ready(out)

    ref = reference(x, params)
    assert out.shape == (S, B, O), out.shape
    err = float(jnp.max(jnp.abs(out - ref)))
    # exact reciprocals + erf surrogate (|err|<1.5e-7) keep max error ~1e-5.
    assert err < 1e-3, err

    print("KERNEL_OK")
</pallas_src>

<mosaic_0001>
module attributes {stable_mosaic.version = 11 : i64} {
  func.func @transformer_block_kernel(%arg0: memref<16x32xf32, #tpu.memory_space<vmem>>, %arg1: memref<248x128xf32, #tpu.memory_space<vmem>>, %arg2: memref<16x48xf32, #tpu.memory_space<vmem>>) attributes {dimension_semantics = [], scalar_prefetch = 0 : i64, scratch_operands = 0 : i64, tpu.core_type = #tpu.core_type<tc>} {
    %c0 = arith.constant 0 : index
    %c0_0 = arith.constant 0 : index
    %0 = vector.load %arg0[%c0, %c0_0] : memref<16x32xf32, #tpu.memory_space<vmem>>, vector<16x32xf32>
    %c0_1 = arith.constant 0 : index
    %c0_2 = arith.constant 0 : index
    %1 = vector.load %arg1[%c0_1, %c0_2] : memref<248x128xf32, #tpu.memory_space<vmem>>, vector<32x96xf32>
    %c32 = arith.constant 32 : index
    %c0_3 = arith.constant 0 : index
    %2 = vector.load %arg1[%c32, %c0_3] : memref<248x128xf32, #tpu.memory_space<vmem>>, vector<32x32xf32>
    %c64 = arith.constant 64 : index
    %c0_4 = arith.constant 0 : index
    %3 = vector.load %arg1[%c64, %c0_4] : memref<248x128xf32, #tpu.memory_space<vmem>>, vector<32x112xf32>
    %c96 = arith.constant 96 : index
    %c0_5 = arith.constant 0 : index
    %4 = vector.load %arg1[%c96, %c0_5] : memref<248x128xf32, #tpu.memory_space<vmem>>, vector<64x48xf32>
    %c160 = arith.constant 160 : index
    %c0_6 = arith.constant 0 : index
    %5 = vector.load %arg1[%c160, %c0_6] : memref<248x128xf32, #tpu.memory_space<vmem>>, vector<1x96xf32>
    %c161 = arith.constant 161 : index
    %c0_7 = arith.constant 0 : index
    %6 = vector.load %arg1[%c161, %c0_7] : memref<248x128xf32, #tpu.memory_space<vmem>>, vector<1x32xf32>
    %c162 = arith.constant 162 : index
    %c0_8 = arith.constant 0 : index
    %7 = vector.load %arg1[%c162, %c0_8] : memref<248x128xf32, #tpu.memory_space<vmem>>, vector<1x112xf32>
    %c163 = arith.constant 163 : index
    %c0_9 = arith.constant 0 : index
    %8 = vector.load %arg1[%c163, %c0_9] : memref<248x128xf32, #tpu.memory_space<vmem>>, vector<1x48xf32>
    %c164 = arith.constant 164 : index
    %c0_10 = arith.constant 0 : index
    %9 = vector.load %arg1[%c164, %c0_10] : memref<248x128xf32, #tpu.memory_space<vmem>>, vector<1x48xf32>
    %c165 = arith.constant 165 : index
    %c0_11 = arith.constant 0 : index
    %10 = vector.load %arg1[%c165, %c0_11] : memref<248x128xf32, #tpu.memory_space<vmem>>, vector<1x48xf32>
    %c168 = arith.constant 168 : index
    %c0_12 = arith.constant 0 : index
    %11 = vector.load %arg1[%c168, %c0_12] : memref<248x128xf32, #tpu.memory_space<vmem>>, vector<64x32xf32>
    %c232 = arith.constant 232 : index
    %c0_13 = arith.constant 0 : index
    %12 = vector.load %arg1[%c232, %c0_13] : memref<248x128xf32, #tpu.memory_space<vmem>>, vector<16x64xf32>
    %cst = arith.constant dense<0.000000e+00> : vector<16x96xf32>
    %13 = tpu.matmul %0, %1, %cst {dimension_numbers = #tpu.dot_dimension_numbers<[1], [0], [0], [1], [0, 0, 1, 1], [], []>} : vector<16x32xf32>, vector<32x96xf32>, vector<16x96xf32> -> vector<16x96xf32>
    %14 = vector.broadcast %5 : vector<1x96xf32> to vector<16x96xf32>
    %15 = arith.addf %13, %14 : vector<16x96xf32>
    %16 = vector.extract_strided_slice %15 {offsets = [0, 0], sizes = [16, 32], strides = [1, 1]} : vector<16x96xf32> to vector<16x32xf32>
    %17 = vector.extract_strided_slice %15 {offsets = [0, 32], sizes = [16, 32], strides = [1, 1]} : vector<16x96xf32> to vector<16x32xf32>
    %18 = vector.extract_strided_slice %15 {offsets = [0, 64], sizes = [16, 32], strides = [1, 1]} : vector<16x96xf32> to vector<16x32xf32>
    %19 = tpu.concatenate %17, %17, %17, %17 in 0 : vector<16x32xf32>, vector<16x32xf32>, vector<16x32xf32>, vector<16x32xf32> -> vector<64x32xf32>
    %20 = arith.mulf %19, %11 : vector<64x32xf32>
    %cst_14 = arith.constant dense<0.000000e+00> : vector<16x64xf32>
    %21 = tpu.matmul %16, %20, %cst_14 {dimension_numbers = #tpu.dot_dimension_numbers<[1], [1], [0], [0], [0, 0, 1, 0], [], []>} : vector<16x32xf32>, vector<64x32xf32>, vector<16x64xf32> -> vector<16x64xf32>
    %22 = arith.addf %21, %12 : vector<16x64xf32>
    %cst_15 = arith.constant dense<0xFF800000> : vector<16xf32>
    %23 = vector.multi_reduction <maximumf>, %22, %cst_15 [1] : vector<16x64xf32> to vector<16xf32>
    %24 = vector.shape_cast %23 : vector<16xf32> to vector<16x1xf32>
    %25 = vector.broadcast %24 : vector<16x1xf32> to vector<16x64xf32>
    %26 = arith.subf %22, %25 : vector<16x64xf32>
    %27 = math.exp %26 : vector<16x64xf32>
    %28 = tpu.concatenate %18, %18, %18, %18 in 0 : vector<16x32xf32>, vector<16x32xf32>, vector<16x32xf32>, vector<16x32xf32> -> vector<64x32xf32>
    %29 = arith.mulf %28, %11 : vector<64x32xf32>
    %30 = tpu.concatenate %29, %11 in 1 : vector<64x32xf32>, vector<64x32xf32> -> vector<64x64xf32>
    %cst_16 = arith.constant dense<0.000000e+00> : vector<16x64xf32>
    %31 = tpu.matmul %27, %30, %cst_16 {dimension_numbers = #tpu.dot_dimension_numbers<[1], [0], [0], [1], [0, 0, 1, 1], [], []>} : vector<16x64xf32>, vector<64x64xf32>, vector<16x64xf32> -> vector<16x64xf32>
    %32 = vector.extract_strided_slice %31 {offsets = [0, 32], sizes = [16, 32], strides = [1, 1]} : vector<16x64xf32> to vector<16x32xf32>
    %cst_17 = arith.constant 1.000000e-30 : f32
    %33 = vector.broadcast %cst_17 : f32 to vector<16x32xf32>
    %34 = arith.maximumf %32, %33 : vector<16x32xf32>
    %35 = vector.extract_strided_slice %31 {offsets = [0, 0], sizes = [16, 32], strides = [1, 1]} : vector<16x64xf32> to vector<16x32xf32>
    %36 = arith.divf %35, %34 : vector<16x32xf32>
    %cst_18 = arith.constant dense<0.000000e+00> : vector<16x32xf32>
    %37 = tpu.matmul %36, %2, %cst_18 {dimension_numbers = #tpu.dot_dimension_numbers<[1], [0], [0], [1], [0, 0, 1, 1], [], []>} : vector<16x32xf32>, vector<32x32xf32>, vector<16x32xf32> -> vector<16x32xf32>
    %38 = vector.broadcast %6 : vector<1x32xf32> to vector<16x32xf32>
    %39 = arith.addf %37, %38 : vector<16x32xf32>
    %40 = arith.addf %0, %39 : vector<16x32xf32>
    %cst_19 = arith.constant dense<0.000000e+00> : vector<16xf32>
    %41 = vector.multi_reduction <add>, %40, %cst_19 [1] : vector<16x32xf32> to vector<16xf32>
    %42 = vector.shape_cast %41 : vector<16xf32> to vector<16x1xf32>
    %cst_20 = arith.constant 3.200000e+01 : f32
    %43 = vector.broadcast %cst_20 : f32 to vector<16x1xf32>
    %44 = arith.divf %42, %43 : vector<16x1xf32>
    %45 = vector.broadcast %44 : vector<16x1xf32> to vector<16x32xf32>
    %46 = arith.subf %40, %45 : vector<16x32xf32>
    %47 = arith.mulf %46, %46 : vector<16x32xf32>
    %cst_21 = arith.constant dense<0.000000e+00> : vector<16xf32>
    %48 = vector.multi_reduction <add>, %47, %cst_21 [1] : vector<16x32xf32> to vector<16xf32>
    %49 = vector.shape_cast %48 : vector<16xf32> to vector<16x1xf32>
    %cst_22 = arith.constant 3.200000e+01 : f32
    %50 = vector.broadcast %cst_22 : f32 to vector<16x1xf32>
    %51 = arith.divf %49, %50 : vector<16x1xf32>
    %52 = vector.broadcast %44 : vector<16x1xf32> to vector<16x32xf32>
    %53 = arith.subf %40, %52 : vector<16x32xf32>
    %cst_23 = arith.constant 9.99999974E-6 : f32
    %54 = vector.broadcast %cst_23 : f32 to vector<16x1xf32>
    %55 = arith.addf %51, %54 : vector<16x1xf32>
    %56 = math.rsqrt %55 : vector<16x1xf32>
    %57 = vector.broadcast %56 : vector<16x1xf32> to vector<16x32xf32>
    %58 = arith.mulf %53, %57 : vector<16x32xf32>
    %cst_24 = arith.constant dense<0.000000e+00> : vector<16x112xf32>
    %59 = tpu.matmul %58, %3, %cst_24 {dimension_numbers = #tpu.dot_dimension_numbers<[1], [0], [0], [1], [0, 0, 1, 1], [], []>} : vector<16x32xf32>, vector<32x112xf32>, vector<16x112xf32> -> vector<16x112xf32>
    %60 = vector.broadcast %7 : vector<1x112xf32> to vector<16x112xf32>
    %61 = arith.addf %59, %60 : vector<16x112xf32>
    %62 = vector.extract_strided_slice %61 {offsets = [0, 0], sizes = [16, 64], strides = [1, 1]} : vector<16x112xf32> to vector<16x64xf32>
    %cst_25 = arith.constant 5.000000e-01 : f32
    %63 = vector.broadcast %cst_25 : f32 to vector<16x64xf32>
    %64 = arith.mulf %63, %62 : vector<16x64xf32>
    %cst_26 = arith.constant 0.707106769 : f32
    %65 = vector.broadcast %cst_26 : f32 to vector<16x64xf32>
    %66 = arith.mulf %62, %65 : vector<16x64xf32>
    %cst_27 = arith.constant 0.000000e+00 : f32
    %67 = vector.broadcast %cst_27 : f32 to vector<16x64xf32>
    %68 = arith.cmpf oge, %66, %67 : vector<16x64xf32>
    %cst_28 = arith.constant 1.000000e+00 : f32
    %cst_29 = arith.constant -1.000000e+00 : f32
    %69 = vector.broadcast %cst_28 : f32 to vector<16x64xf32>
    %70 = vector.broadcast %cst_29 : f32 to vector<16x64xf32>
    %71 = arith.select %68, %69, %70 : vector<16x64xi1>, vector<16x64xf32>
    %72 = math.absf %66 : vector<16x64xf32>
    %cst_30 = arith.constant 0.327591091 : f32
    %73 = vector.broadcast %cst_30 : f32 to vector<16x64xf32>
    %74 = arith.mulf %73, %72 : vector<16x64xf32>
    %cst_31 = arith.constant 1.000000e+00 : f32
    %75 = vector.broadcast %cst_31 : f32 to vector<16x64xf32>
    %76 = arith.addf %75, %74 : vector<16x64xf32>
    %cst_32 = arith.constant 1.000000e+00 : f32
    %77 = vector.broadcast %cst_32 : f32 to vector<16x64xf32>
    %78 = arith.divf %77, %76 : vector<16x64xf32>
    %cst_33 = arith.constant 1.06140542 : f32
    %79 = vector.broadcast %cst_33 : f32 to vector<16x64xf32>
    %80 = arith.mulf %79, %78 : vector<16x64xf32>
    %cst_34 = arith.constant -1.45315206 : f32
    %81 = vector.broadcast %cst_34 : f32 to vector<16x64xf32>
    %82 = arith.addf %80, %81 : vector<16x64xf32>
    %83 = arith.mulf %82, %78 : vector<16x64xf32>
    %cst_35 = arith.constant 1.42141378 : f32
    %84 = vector.broadcast %cst_35 : f32 to vector<16x64xf32>
    %85 = arith.addf %83, %84 : vector<16x64xf32>
    %86 = arith.mulf %85, %78 : vector<16x64xf32>
    %cst_36 = arith.constant -0.284496725 : f32
    %87 = vector.broadcast %cst_36 : f32 to vector<16x64xf32>
    %88 = arith.addf %86, %87 : vector<16x64xf32>
    %89 = arith.mulf %88, %78 : vector<16x64xf32>
    %cst_37 = arith.constant 0.254829586 : f32
    %90 = vector.broadcast %cst_37 : f32 to vector<16x64xf32>
    %91 = arith.addf %89, %90 : vector<16x64xf32>
    %92 = arith.mulf %91, %78 : vector<16x64xf32>
    %cst_38 = arith.constant 0.000000e+00 : f32
    %93 = vector.broadcast %cst_38 : f32 to vector<16x64xf32>
    %94 = arith.subf %93, %72 : vector<16x64xf32>
    %95 = arith.mulf %94, %72 : vector<16x64xf32>
    %96 = math.exp %95 : vector<16x64xf32>
    %97 = arith.mulf %92, %96 : vector<16x64xf32>
    %cst_39 = arith.constant 1.000000e+00 : f32
    %98 = vector.broadcast %cst_39 : f32 to vector<16x64xf32>
    %99 = arith.subf %98, %97 : vector<16x64xf32>
    %100 = arith.mulf %71, %99 : vector<16x64xf32>
    %cst_40 = arith.constant 1.000000e+00 : f32
    %101 = vector.broadcast %cst_40 : f32 to vector<16x64xf32>
    %102 = arith.addf %101, %100 : vector<16x64xf32>
    %103 = arith.mulf %64, %102 : vector<16x64xf32>
    %104 = vector.extract_strided_slice %61 {offsets = [0, 64], sizes = [16, 48], strides = [1, 1]} : vector<16x112xf32> to vector<16x48xf32>
    %cst_41 = arith.constant dense<0.000000e+00> : vector<16x48xf32>
    %105 = tpu.matmul %103, %4, %cst_41 {dimension_numbers = #tpu.dot_dimension_numbers<[1], [0], [0], [1], [0, 0, 1, 1], [], []>} : vector<16x64xf32>, vector<64x48xf32>, vector<16x48xf32> -> vector<16x48xf32>
    %106 = vector.broadcast %8 : vector<1x48xf32> to vector<16x48xf32>
    %107 = arith.addf %105, %106 : vector<16x48xf32>
    %108 = arith.addf %104, %107 : vector<16x48xf32>
    %cst_42 = arith.constant dense<0.000000e+00> : vector<16xf32>
    %109 = vector.multi_reduction <add>, %108, %cst_42 [1] : vector<16x48xf32> to vector<16xf32>
    %110 = vector.shape_cast %109 : vector<16xf32> to vector<16x1xf32>
    %cst_43 = arith.constant 4.800000e+01 : f32
    %111 = vector.broadcast %cst_43 : f32 to vector<16x1xf32>
    %112 = arith.divf %110, %111 : vector<16x1xf32>
    %113 = vector.broadcast %112 : vector<16x1xf32> to vector<16x48xf32>
    %114 = arith.subf %108, %113 : vector<16x48xf32>
    %115 = arith.mulf %114, %114 : vector<16x48xf32>
    %cst_44 = arith.constant dense<0.000000e+00> : vector<16xf32>
    %116 = vector.multi_reduction <add>, %115, %cst_44 [1] : vector<16x48xf32> to vector<16xf32>
    %117 = vector.shape_cast %116 : vector<16xf32> to vector<16x1xf32>
    %cst_45 = arith.constant 4.800000e+01 : f32
    %118 = vector.broadcast %cst_45 : f32 to vector<16x1xf32>
    %119 = arith.divf %117, %118 : vector<16x1xf32>
    %120 = vector.broadcast %112 : vector<16x1xf32> to vector<16x48xf32>
    %121 = arith.subf %108, %120 : vector<16x48xf32>
    %cst_46 = arith.constant 9.99999974E-6 : f32
    %122 = vector.broadcast %cst_46 : f32 to vector<16x1xf32>
    %123 = arith.addf %119, %122 : vector<16x1xf32>
    %124 = math.rsqrt %123 : vector<16x1xf32>
    %125 = vector.broadcast %124 : vector<16x1xf32> to vector<16x48xf32>
    %126 = arith.mulf %121, %125 : vector<16x48xf32>
    %127 = vector.broadcast %9 : vector<1x48xf32> to vector<16x48xf32>
    %128 = arith.mulf %126, %127 : vector<16x48xf32>
    %129 = vector.broadcast %10 : vector<1x48xf32> to vector<16x48xf32>
    %130 = arith.addf %128, %129 : vector<16x48xf32>
    %c0_47 = arith.constant 0 : index
    %c0_48 = arith.constant 0 : index
    %131 = vector.load %arg2[%c0_47, %c0_48] : memref<16x48xf32, #tpu.memory_space<vmem>>, vector<16x48xf32>
    tpu.vector_store %arg2[%c0_47, %c0_48], %130 {strides = array<i32>} : memref<16x48xf32, #tpu.memory_space<vmem>>, vector<16x48xf32>,
    return
  }
}

</mosaic_0001>

<llo_original>
// kernel: tpu_custom_call.1
$region0: #{tpu_custom_call.1}
  #allocation0 [shape = 'u32[]', space=smem, size = 0x4, offset = 0x4, fixed_abs, tag = 'smem constant byte address 0x4 - core index']
  #allocation1 [shape = 'u32[144,128]{1,0:T(1,128)}', space=vmem, size = 0x12000, scoped, tag = 'internal scratch']
  %s0 = inlined_call_operand.hbm [shape: f32[16,32], index: 0, kind: input, shape index: {}]
  %s1 = inlined_call_operand.hbm [shape: f32[248,128], index: 1, kind: input, shape index: {}]
  %s2 = inlined_call_operand.hbm [shape: f32[16,48], index: 2, kind: output, shape index: {}]
  %s3 = sld [smem:[#allocation0]]
  $region26: #{tpu_custom_call.1} parent=0
    _
  %s5 = ssub.s32 1, %s3
  %s6 = scalar_select 0, %s5, %s3
  $region1: #{tpu_custom_call.1} parent=0
    #allocation2 [shape = 'u8[8192]{0}', space=vmem, size = 0x2000, scoped, tag = 'input window, operand 0, single buffered']
    #allocation3 [shape = 's32[1]{0}', space=sflag, size = 0x4, scoped, tag = 'scoped memory for tpu_custom_call.1']
    #allocation4 [shape = 's32[1]{0}', space=sflag, size = 0x4, scoped, tag = 'scoped memory for tpu_custom_call.1']
    #allocation5 [shape = 'u8[126976]{0}', space=vmem, size = 0x1f000, scoped, tag = 'input window, operand 1, single buffered']
    #allocation6 [shape = 's32[1]{0}', space=sflag, size = 0x4, scoped, tag = 'scoped memory for tpu_custom_call.1']
    #allocation7 [shape = 'u8[8192]{0}', space=vmem, size = 0x2000, scoped, tag = 'output window, operand 0, single buffered']
    %7 = vsyncpa [#allocation3], 0
    %8 = vsyncpa [#allocation6], 0
    %9 = vsyncpa [#allocation4], 0
    // Predicated region
    $region2: #{tpu_custom_call.1} parent=1 // pred_check
      _
    $region3: #{tpu_custom_call.1} parent=1 // pred_check_branch
      %11 = sbr.rel (0) target = $region5
    $region4: #{tpu_custom_call.1} parent=1 // pred_region
      %s13 = ssub.s32 256, 256
      %14 = vsyncadd [#allocation3], %s13
      %s15 = sshll.u32 [#allocation2], 4
      %s16 = int_to_ptr.vmem [resolvable:$true] %s15
      %21 = dma.hbm_to_vmem [thread:$0]  %s0, 256, %s16, [#allocation3], 128, 128, 8
    $region5: #{tpu_custom_call.1} parent=1 // pred_fallthru
      _
    // Predicated region
    $region6: #{tpu_custom_call.1} parent=1 // pred_check
      _
    $region7: #{tpu_custom_call.1} parent=1 // pred_check_branch
      %23 = sbr.rel (0) target = $region9
    $region8: #{tpu_custom_call.1} parent=1 // pred_region
      %s25 = ssub.s32 3968, 3968
      %26 = vsyncadd [#allocation6], %s25
      %s27 = sshll.u32 [#allocation5], 4
      %s28 = int_to_ptr.vmem [resolvable:$true] %s27
      %33 = dma.hbm_to_vmem [thread:$0]  %s1, 3968, %s28, [#allocation6], 128, 128, 8
    $region9: #{tpu_custom_call.1} parent=1 // pred_fallthru
      _
    // Predicated region
    $region10: #{tpu_custom_call.1} parent=1 // pred_check
      _
    $region11: #{tpu_custom_call.1} parent=1 // pred_check_branch
      %35 = sbr.rel (0) target = $region13
    $region12: #{tpu_custom_call.1} parent=1 // pred_region
      %36 = dma.done [#allocation3], 256
    $region13: #{tpu_custom_call.1} parent=1 // pred_fallthru
      _
    // Predicated region
    $region14: #{tpu_custom_call.1} parent=1 // pred_check
      _
    $region15: #{tpu_custom_call.1} parent=1 // pred_check_branch
      %38 = sbr.rel (0) target = $region17
    $region16: #{tpu_custom_call.1} parent=1 // pred_region
      %39 = dma.done [#allocation6], 3968
    $region17: #{tpu_custom_call.1} parent=1 // pred_fallthru
      _
    %v40 = vld [vmem:[#allocation2] sm:$0xff]
    %v41 = vld [vmem:[#allocation2 + $0x8] sm:$0xff]
    %v42 = vld [vmem:[#allocation5] sm:$0xff]
    %v43 = vld [vmem:[#allocation5 + $0x8] sm:$0xff]
    %v44 = vld [vmem:[#allocation5 + $0x10] sm:$0xff]
    %v45 = vld [vmem:[#allocation5 + $0x18] sm:$0xff]
    %v46 = vld [vmem:[#allocation5 + $0x20] sm:$0xff]
    %v47 = vld [vmem:[#allocation5 + $0x28] sm:$0xff]
    %v48 = vld [vmem:[#allocation5 + $0x30] sm:$0xff]
    %v49 = vld [vmem:[#allocation5 + $0x38] sm:$0xff]
    %v50 = vld [vmem:[#allocation5 + $0x40] sm:$0xff]
    %v51 = vld [vmem:[#allocation5 + $0x48] sm:$0xff]
    %v52 = vld [vmem:[#allocation5 + $0x50] sm:$0xff]
    %v53 = vld [vmem:[#allocation5 + $0x58] sm:$0xff]
    %v54 = vld [vmem:[#allocation5 + $0x60] sm:$0xff]
    %v55 = vld [vmem:[#allocation5 + $0x68] sm:$0xff]
    %v56 = vld [vmem:[#allocation5 + $0x70] sm:$0xff]
    %v57 = vld [vmem:[#allocation5 + $0x78] sm:$0xff]
    %v58 = vld [vmem:[#allocation5 + $0x80] sm:$0xff]
    %v59 = vld [vmem:[#allocation5 + $0x88] sm:$0xff]
    %v60 = vld [vmem:[#allocation5 + $0x90] sm:$0xff]
    %v61 = vld [vmem:[#allocation5 + $0x98] sm:$0xff]
    %v62 = vld [vmem:[#allocation5 + $0xa0] sm:$0x1]
    %v63 = vld [vmem:[#allocation5 + $0xa1] sm:$0x1]
    %v64 = vld [vmem:[#allocation5 + $0xa2] sm:$0x1]
    %v65 = vld [vmem:[#allocation5 + $0xa3] sm:$0x1]
    %v66 = vld [vmem:[#allocation5 + $0xa4] sm:$0x1]
    %v67 = vld [vmem:[#allocation5 + $0xa5] sm:$0x1]
    %v68 = vld [vmem:[#allocation5 + $0xa8] sm:$0xff]
    %v69 = vld [vmem:[#allocation5 + $0xb0] sm:$0xff]
    %v70 = vld [vmem:[#allocation5 + $0xb8] sm:$0xff]
    %v71 = vld [vmem:[#allocation5 + $0xc0] sm:$0xff]
    %v72 = vld [vmem:[#allocation5 + $0xc8] sm:$0xff]
    %v73 = vld [vmem:[#allocation5 + $0xd0] sm:$0xff]
    %v74 = vld [vmem:[#allocation5 + $0xd8] sm:$0xff]
    %v75 = vld [vmem:[#allocation5 + $0xe0] sm:$0xff]
    %v76 = vld [vmem:[#allocation5 + $0xe8] sm:$0xff]
    %v77 = vld [vmem:[#allocation5 + $0xf0] sm:$0xff]
    %v78 = vlaneseq
    %v79 = vshrl.u32 %v78, 7
    %v80 = vsub.s32 0, %v79
    %v81 = vrot.slane %v62, %v80
    %vm82 = vcmask 261120
    %v84 = vsel %vm82, %v40, 0
    %v87 = vsel %vm82, %v41, 0
    %89 = vmatprep.subr.mxu0 0.0
    %90 = vmatpush1.msra.mxu0 0.0
    %91 = vmatprep.subr.mxu0 0.0
    %92 = vmatpush1.msra.mxu0 0.0
    %93 = vmatprep.subr.mxu0 0.0
    %94 = vmatpush1.msra.mxu0 0.0
    %95 = vmatprep.subr.mxu0 0.0
    %96 = vmatpush1.msra.mxu0 0.0
    %97 = vmatprep.subr.mxu0 0.0
    %98 = vmatpush1.msra.mxu0 0.0
    %99 = vmatprep.subr.mxu0 0.0
    %100 = vmatpush1.msra.mxu0 0.0
    %101 = vmatprep.subr.mxu0 0.0
    %102 = vmatpush1.msra.mxu0 0.0
    %103 = vmatprep.subr.mxu0 0.0
    %104 = vmatpush1.msra.mxu0 0.0
    %105 = vmatprep.subr.mxu0 0.0
    %106 = vmatpush1.msra.mxu0 0.0
    %107 = vmatprep.subr.mxu0 0.0
    %108 = vmatpush1.msra.mxu0 0.0
    %109 = vmatprep.subr.mxu0 0.0
    %110 = vmatpush1.msra.mxu0 0.0
    %111 = vmatprep.subr.mxu0 0.0
    %112 = vmatpush1.msra.mxu0 0.0
    %113 = vmatprep.subr.mxu0 0.0
    %114 = vmatpush1.msra.mxu0 %v45
    %115 = vmatprep.subr.mxu0 0.0
    %116 = vmatpush1.msra.mxu0 %v44
    %117 = vmatprep.subr.mxu0 0.0
    %118 = vmatpush1.msra.mxu0 %v43
    %119 = vmatprep.subr.mxu0 0.0
    %120 = vmatpush1.msra.mxu0 %v42
    %121 = vmatprep.subr.mxu0 0.0
    %122 = vmatpush2.msra.mxu0 0.0
    %123 = vmatprep.subr.mxu0 0.0
    %124 = vmatpush2.msra.mxu0 0.0
    %125 = vmatprep.subr.mxu0 0.0
    %126 = vmatpush2.msra.mxu0 0.0
    %127 = vmatprep.subr.mxu0 0.0
    %128 = vmatpush2.msra.mxu0 0.0
    %129 = vmatprep.subr.mxu0 0.0
    %130 = vmatpush2.msra.mxu0 0.0
    %131 = vmatprep.subr.mxu0 0.0
    %132 = vmatpush2.msra.mxu0 0.0
    %133 = vmatprep.subr.mxu0 0.0
    %134 = vmatpush2.msra.mxu0 0.0
    %135 = vmatprep.subr.mxu0 0.0
    %136 = vmatpush2.msra.mxu0 0.0
    %137 = vmatprep.subr.mxu0 0.0
    %138 = vmatpush2.msra.mxu0 0.0
    %139 = vmatprep.subr.mxu0 0.0
    %140 = vmatpush2.msra.mxu0 0.0
    %141 = vmatprep.subr.mxu0 0.0
    %142 = vmatpush2.msra.mxu0 0.0
    %143 = vmatprep.subr.mxu0 0.0
    %144 = vmatpush2.msra.mxu0 0.0
    %145 = vmatprep.subr.mxu0 0.0
    %146 = vmatpush2.msra.mxu0 0.0
    %147 = vmatprep.subr.mxu0 0.0
    %148 = vmatpush2.msra.mxu0 0.0
    %149 = vmatprep.subr.mxu0 0.0
    %150 = vmatpush2.msra.mxu0 0.0
    %151 = vmatprep.subr.mxu0 0.0
    %152 = vmatpush2.msra.mxu0 0.0
    %153 = vmatprep.mubr.f32.mxu0 0.0
    %154 = vmatmul.mubr.f32.gmra.mxu0 %v84
    %v155 = vpop.f32.mrf.mxu0
    %v156 = vadd.f32 %v81, %v155
    %v157 = vpop.f32.mrf.mxu0
    %158 = vmatprep.mubr.f32.mxu0 0.0
    %159 = vmatmul.mubr.f32.gmra.mxu0 %v87
    %v160 = vpop.f32.mrf.mxu0
    %v161 = vadd.f32 %v81, %v160
    %v162 = vpop.f32.mrf.mxu0
    %163 = vdwg.mxu0
    %172 = vrot.lane.b32.xlu0 %v68, 32
    %v173 = vpop.permute.xlu0 %172
    %174 = vrot.lane.b32.xlu0 %v69, 32
    %v175 = vpop.permute.xlu0 %174
    %176 = vrot.lane.b32.xlu0 %v70, 32
    %v177 = vpop.permute.xlu0 %176
    %178 = vrot.lane.b32.xlu0 %v71, 32
    %v179 = vpop.permute.xlu0 %178
    %180 = vrot.lane.b32.xlu0 %v72, 32
    %v181 = vpop.permute.xlu0 %180
    %182 = vrot.lane.b32.xlu0 %v73, 32
    %v183 = vpop.permute.xlu0 %182
    %184 = vrot.lane.b32.xlu0 %v74, 32
    %v185 = vpop.permute.xlu0 %184
    %186 = vrot.lane.b32.xlu0 %v75, 32
    %v187 = vpop.permute.xlu0 %186
    %v196 = vmul.f32 %v156, %v173
    %v197 = vmul.f32 %v161, %v175
    %v198 = vmul.f32 %v156, %v177
    %v199 = vmul.f32 %v161, %v179
    %v200 = vmul.f32 %v156, %v181
    %v201 = vmul.f32 %v161, %v183
    %v202 = vmul.f32 %v156, %v185
    %v203 = vmul.f32 %v161, %v187
    %212 = vrot.lane.b32.xlu0 %v196, 96
    %v213 = vpop.permute.xlu0 %212
    %214 = vrot.lane.b32.xlu0 %v197, 96
    %v215 = vpop.permute.xlu0 %214
    %216 = vrot.lane.b32.xlu0 %v198, 96
    %v217 = vpop.permute.xlu0 %216
    %218 = vrot.lane.b32.xlu0 %v199, 96
    %v219 = vpop.permute.xlu0 %218
    %220 = vrot.lane.b32.xlu0 %v200, 96
    %v221 = vpop.permute.xlu0 %220
    %222 = vrot.lane.b32.xlu0 %v201, 96
    %v223 = vpop.permute.xlu0 %222
    %224 = vrot.lane.b32.xlu0 %v202, 96
    %v225 = vpop.permute.xlu0 %224
    %226 = vrot.lane.b32.xlu0 %v203, 96
    %v227 = vpop.permute.xlu0 %226
    %v229 = vsel %vm82, %v156, 0
    %v232 = vsel %vm82, %v161, 0
    %v234 = vsel %vm82, %v213, 0
    %v236 = vsel %vm82, %v215, 0
    %v238 = vsel %vm82, %v217, 0
    %v240 = vsel %vm82, %v219, 0
    %v242 = vsel %vm82, %v221, 0
    %v244 = vsel %vm82, %v223, 0
    %v246 = vsel %vm82, %v225, 0
    %v248 = vsel %vm82, %v227, 0
    %250 = vmatprep.subr.mxu0 0.0
    %251 = vmatpush1.xpose.msra.mxu0 0.0
    %252 = vmatprep.subr.mxu0 0.0
    %253 = vmatpush1.xpose.msra.mxu0 0.0
    %254 = vmatprep.subr.mxu0 0.0
    %255 = vmatpush1.xpose.msra.mxu0 0.0
    %256 = vmatprep.subr.mxu0 0.0
    %257 = vmatpush1.xpose.msra.mxu0 0.0
    %258 = vmatprep.subr.mxu0 0.0
    %259 = vmatpush1.xpose.msra.mxu0 0.0
    %260 = vmatprep.subr.mxu0 0.0
    %261 = vmatpush1.xpose.msra.mxu0 0.0
    %262 = vmatprep.subr.mxu0 0.0
    %263 = vmatpush1.xpose.msra.mxu0 0.0
    %264 = vmatprep.subr.mxu0 0.0
    %265 = vmatpush1.xpose.msra.mxu0 0.0
    %266 = vmatprep.subr.mxu0 0.0
    %267 = vmatpush1.xpose.msra.mxu0 %v248
    %268 = vmatprep.subr.mxu0 0.0
    %269 = vmatpush1.xpose.msra.mxu0 %v246
    %270 = vmatprep.subr.mxu0 0.0
    %271 = vmatpush1.xpose.msra.mxu0 %v244
    %272 = vmatprep.subr.mxu0 0.0
    %273 = vmatpush1.xpose.msra.mxu0 %v242
    %274 = vmatprep.subr.mxu0 0.0
    %275 = vmatpush1.xpose.msra.mxu0 %v240
    %276 = vmatprep.subr.mxu0 0.0
    %277 = vmatpush1.xpose.msra.mxu0 %v238
    %278 = vmatprep.subr.mxu0 0.0
    %279 = vmatpush1.xpose.msra.mxu0 %v236
    %280 = vmatprep.subr.mxu0 0.0
    %281 = vmatpush1.xpose.msra.mxu0 %v234
    %282 = vmatprep.subr.mxu0 0.0
    %283 = vmatpush2.xpose.msra.mxu0 0.0
    %284 = vmatprep.subr.mxu0 0.0
    %285 = vmatpush2.xpose.msra.mxu0 0.0
    %286 = vmatprep.subr.mxu0 0.0
    %287 = vmatpush2.xpose.msra.mxu0 0.0
    %288 = vmatprep.subr.mxu0 0.0
    %289 = vmatpush2.xpose.msra.mxu0 0.0
    %290 = vmatprep.subr.mxu0 0.0
    %291 = vmatpush2.xpose.msra.mxu0 0.0
    %292 = vmatprep.subr.mxu0 0.0
    %293 = vmatpush2.xpose.msra.mxu0 0.0
    %294 = vmatprep.subr.mxu0 0.0
    %295 = vmatpush2.xpose.msra.mxu0 0.0
    %296 = vmatprep.subr.mxu0 0.0
    %297 = vmatpush2.xpose.msra.mxu0 0.0
    %298 = vmatprep.subr.mxu0 0.0
    %299 = vmatpush2.xpose.msra.mxu0 0.0
    %300 = vmatprep.subr.mxu0 0.0
    %301 = vmatpush2.xpose.msra.mxu0 0.0
    %302 = vmatprep.subr.mxu0 0.0
    %303 = vmatpush2.xpose.msra.mxu0 0.0
    %304 = vmatprep.subr.mxu0 0.0
    %305 = vmatpush2.xpose.msra.mxu0 0.0
    %306 = vmatprep.subr.mxu0 0.0
    %307 = vmatpush2.xpose.msra.mxu0 0.0
    %308 = vmatprep.subr.mxu0 0.0
    %309 = vmatpush2.xpose.msra.mxu0 0.0
    %310 = vmatprep.subr.mxu0 0.0
    %311 = vmatpush2.xpose.msra.mxu0 0.0
    %312 = vmatprep.subr.mxu0 0.0
    %313 = vmatpush2.xpose.msra.mxu0 0.0
    %314 = vmatprep.mubr.f32.mxu0 0.0
    %315 = vmatmul.mubr.f32.gmra.mxu0 %v229
    %v316 = vpop.f32.mrf.mxu0
    %v317 = vadd.f32 %v76, %v316
    %v318 = vpop.f32.mrf.mxu0
    %319 = vmatprep.mubr.f32.mxu0 0.0
    %320 = vmatmul.mubr.f32.gmra.mxu0 %v232
    %v321 = vpop.f32.mrf.mxu0
    %v322 = vadd.f32 %v77, %v321
    %v323 = vpop.f32.mrf.mxu0
    %324 = vdwg.mxu0
    %vm325 = vcmask 523264
    %v326 = vsel %vm325, %v317, -inf
    %327 = vmax.xlane.f32.xlu0 %v326
    %v328 = vpop.xlane.xlu0 %327
    %v329 = vsel %vm325, %v322, -inf
    %330 = vmax.xlane.f32.xlu0 %v329
    %v331 = vpop.xlane.xlu0 %330
    %v332 = vsub.f32 %v317, %v328
    %v333 = vsub.f32 %v322, %v331
    %v334 = vmul.f32 %v332, 1.442695
    %v335 = vpow.pop %v334
    %v336 = vmul.f32 %v333, 1.442695
    %v337 = vpow.pop %v336
    %338 = vrot.lane.b32.xlu0 %v68, 64
    %v339 = vpop.permute.xlu0 %338
    %340 = vrot.lane.b32.xlu0 %v69, 64
    %v341 = vpop.permute.xlu0 %340
    %342 = vrot.lane.b32.xlu0 %v70, 64
    %v343 = vpop.permute.xlu0 %342
    %344 = vrot.lane.b32.xlu0 %v71, 64
    %v345 = vpop.permute.xlu0 %344
    %346 = vrot.lane.b32.xlu0 %v72, 64
    %v347 = vpop.permute.xlu0 %346
    %348 = vrot.lane.b32.xlu0 %v73, 64
    %v349 = vpop.permute.xlu0 %348
    %350 = vrot.lane.b32.xlu0 %v74, 64
    %v351 = vpop.permute.xlu0 %350
    %352 = vrot.lane.b32.xlu0 %v75, 64
    %v353 = vpop.permute.xlu0 %352
    %v362 = vmul.f32 %v156, %v339
    %v363 = vmul.f32 %v161, %v341
    %v364 = vmul.f32 %v156, %v343
    %v365 = vmul.f32 %v161, %v345
    %v366 = vmul.f32 %v156, %v347
    %v367 = vmul.f32 %v161, %v349
    %v368 = vmul.f32 %v156, %v351
    %v369 = vmul.f32 %v161, %v353
    %378 = vrot.lane.b32.xlu0 %v362, 64
    %v379 = vpop.permute.xlu0 %378
    %380 = vrot.lane.b32.xlu0 %v363, 64
    %v381 = vpop.permute.xlu0 %380
    %382 = vrot.lane.b32.xlu0 %v364, 64
    %v383 = vpop.permute.xlu0 %382
    %384 = vrot.lane.b32.xlu0 %v365, 64
    %v385 = vpop.permute.xlu0 %384
    %386 = vrot.lane.b32.xlu0 %v366, 64
    %v387 = vpop.permute.xlu0 %386
    %388 = vrot.lane.b32.xlu0 %v367, 64
    %v389 = vpop.permute.xlu0 %388
    %390 = vrot.lane.b32.xlu0 %v368, 64
    %v391 = vpop.permute.xlu0 %390
    %392 = vrot.lane.b32.xlu0 %v369, 64
    %v393 = vpop.permute.xlu0 %392
    %v402 = vsel %vm82, %v379, %v173
    %v403 = vsel %vm82, %v381, %v175
    %v404 = vsel %vm82, %v383, %v177
    %v405 = vsel %vm82, %v385, %v179
    %v406 = vsel %vm82, %v387, %v181
    %v407 = vsel %vm82, %v389, %v183
    %v408 = vsel %vm82, %v391, %v185
    %v409 = vsel %vm82, %v393, %v187
    %v411 = vsel %vm325, %v335, 0
    %v414 = vsel %vm325, %v337, 0
    %416 = vmatprep.subr.mxu0 0.0
    %417 = vmatpush1.msra.mxu0 0.0
    %418 = vmatprep.subr.mxu0 0.0
    %419 = vmatpush1.msra.mxu0 0.0
    %420 = vmatprep.subr.mxu0 0.0
    %421 = vmatpush1.msra.mxu0 0.0
    %422 = vmatprep.subr.mxu0 0.0
    %423 = vmatpush1.msra.mxu0 0.0
    %424 = vmatprep.subr.mxu0 0.0
    %425 = vmatpush1.msra.mxu0 0.0
    %426 = vmatprep.subr.mxu0 0.0
    %427 = vmatpush1.msra.mxu0 0.0
    %428 = vmatprep.subr.mxu0 0.0
    %429 = vmatpush1.msra.mxu0 0.0
    %430 = vmatprep.subr.mxu0 0.0
    %431 = vmatpush1.msra.mxu0 0.0
    %432 = vmatprep.subr.mxu0 0.0
    %433 = vmatpush1.msra.mxu0 %v409
    %434 = vmatprep.subr.mxu0 0.0
    %435 = vmatpush1.msra.mxu0 %v408
    %436 = vmatprep.subr.mxu0 0.0
    %437 = vmatpush1.msra.mxu0 %v407
    %438 = vmatprep.subr.mxu0 0.0
    %439 = vmatpush1.msra.mxu0 %v406
    %440 = vmatprep.subr.mxu0 0.0
    %441 = vmatpush1.msra.mxu0 %v405
    %442 = vmatprep.subr.mxu0 0.0
    %443 = vmatpush1.msra.mxu0 %v404
    %444 = vmatprep.subr.mxu0 0.0
    %445 = vmatpush1.msra.mxu0 %v403
    %446 = vmatprep.subr.mxu0 0.0
    %447 = vmatpush1.msra.mxu0 %v402
    %448 = vmatprep.subr.mxu0 0.0
    %449 = vmatpush2.msra.mxu0 0.0
    %450 = vmatprep.subr.mxu0 0.0
    %451 = vmatpush2.msra.mxu0 0.0
    %452 = vmatprep.subr.mxu0 0.0
    %453 = vmatpush2.msra.mxu0 0.0
    %454 = vmatprep.subr.mxu0 0.0
    %455 = vmatpush2.msra.mxu0 0.0
    %456 = vmatprep.subr.mxu0 0.0
    %457 = vmatpush2.msra.mxu0 0.0
    %458 = vmatprep.subr.mxu0 0.0
    %459 = vmatpush2.msra.mxu0 0.0
    %460 = vmatprep.subr.mxu0 0.0
    %461 = vmatpush2.msra.mxu0 0.0
    %462 = vmatprep.subr.mxu0 0.0
    %463 = vmatpush2.msra.mxu0 0.0
    %464 = vmatprep.subr.mxu0 0.0
    %465 = vmatpush2.msra.mxu0 0.0
    %466 = vmatprep.subr.mxu0 0.0
    %467 = vmatpush2.msra.mxu0 0.0
    %468 = vmatprep.subr.mxu0 0.0
    %469 = vmatpush2.msra.mxu0 0.0
    %470 = vmatprep.subr.mxu0 0.0
    %471 = vmatpush2.msra.mxu0 0.0
    %472 = vmatprep.subr.mxu0 0.0
    %473 = vmatpush2.msra.mxu0 0.0
    %474 = vmatprep.subr.mxu0 0.0
    %475 = vmatpush2.msra.mxu0 0.0
    %476 = vmatprep.subr.mxu0 0.0
    %477 = vmatpush2.msra.mxu0 0.0
    %478 = vmatprep.subr.mxu0 0.0
    %479 = vmatpush2.msra.mxu0 0.0
    %480 = vmatprep.mubr.f32.mxu0 0.0
    %481 = vmatmul.mubr.f32.gmra.mxu0 %v411
    %v482 = vpop.f32.mrf.mxu0
    %v483 = vadd.f32 0.0, %v482
    %v484 = vpop.f32.mrf.mxu0
    %485 = vmatprep.mubr.f32.mxu0 0.0
    %486 = vmatmul.mubr.f32.gmra.mxu0 %v414
    %v487 = vpop.f32.mrf.mxu0
    %v488 = vadd.f32 0.0, %v487
    %v489 = vpop.f32.mrf.mxu0
    %490 = vdwg.mxu0
    %v491 = vmax.f32 %v483, 1e-30
    %v492 = vmax.f32 %v488, 1e-30
    %495 = vrot.lane.b32.xlu0 %v491, 96
    %v496 = vpop.permute.xlu0 %495
    %497 = vrot.lane.b32.xlu0 %v492, 96
    %v498 = vpop.permute.xlu0 %497
    %v501 = vrcp.pop %v496
    %v502 = vmul.f32 %v483, %v501
    %v503 = vrcp.pop %v498
    %v504 = vmul.f32 %v488, %v503
    %v505 = vlaneseq
    %v506 = vshrl.u32 %v505, 7
    %v507 = vsub.s32 0, %v506
    %v508 = vrot.slane %v63, %v507
    %v510 = vsel %vm82, %v502, 0
    %v513 = vsel %vm82, %v504, 0
    %515 = vmatprep.subr.mxu0 0.0
    %516 = vmatpush1.msra.mxu0 0.0
    %517 = vmatprep.subr.mxu0 0.0
    %518 = vmatpush1.msra.mxu0 0.0
    %519 = vmatprep.subr.mxu0 0.0
    %520 = vmatpush1.msra.mxu0 0.0
    %521 = vmatprep.subr.mxu0 0.0
    %522 = vmatpush1.msra.mxu0 0.0
    %523 = vmatprep.subr.mxu0 0.0
    %524 = vmatpush1.msra.mxu0 0.0
    %525 = vmatprep.subr.mxu0 0.0
    %526 = vmatpush1.msra.mxu0 0.0
    %527 = vmatprep.subr.mxu0 0.0
    %528 = vmatpush1.msra.mxu0 0.0
    %529 = vmatprep.subr.mxu0 0.0
    %530 = vmatpush1.msra.mxu0 0.0
    %531 = vmatprep.subr.mxu0 0.0
    %532 = vmatpush1.msra.mxu0 0.0
    %533 = vmatprep.subr.mxu0 0.0
    %534 = vmatpush1.msra.mxu0 0.0
    %535 = vmatprep.subr.mxu0 0.0
    %536 = vmatpush1.msra.mxu0 0.0
    %537 = vmatprep.subr.mxu0 0.0
    %538 = vmatpush1.msra.mxu0 0.0
    %539 = vmatprep.subr.mxu0 0.0
    %540 = vmatpush1.msra.mxu0 %v49
    %541 = vmatprep.subr.mxu0 0.0
    %542 = vmatpush1.msra.mxu0 %v48
    %543 = vmatprep.subr.mxu0 0.0
    %544 = vmatpush1.msra.mxu0 %v47
    %545 = vmatprep.subr.mxu0 0.0
    %546 = vmatpush1.msra.mxu0 %v46
    %547 = vmatprep.subr.mxu0 0.0
    %548 = vmatpush2.msra.mxu0 0.0
    %549 = vmatprep.subr.mxu0 0.0
    %550 = vmatpush2.msra.mxu0 0.0
    %551 = vmatprep.subr.mxu0 0.0
    %552 = vmatpush2.msra.mxu0 0.0
    %553 = vmatprep.subr.mxu0 0.0
    %554 = vmatpush2.msra.mxu0 0.0
    %555 = vmatprep.subr.mxu0 0.0
    %556 = vmatpush2.msra.mxu0 0.0
    %557 = vmatprep.subr.mxu0 0.0
    %558 = vmatpush2.msra.mxu0 0.0
    %559 = vmatprep.subr.mxu0 0.0
    %560 = vmatpush2.msra.mxu0 0.0
    %561 = vmatprep.subr.mxu0 0.0
    %562 = vmatpush2.msra.mxu0 0.0
    %563 = vmatprep.subr.mxu0 0.0
    %564 = vmatpush2.msra.mxu0 0.0
    %565 = vmatprep.subr.mxu0 0.0
    %566 = vmatpush2.msra.mxu0 0.0
    %567 = vmatprep.subr.mxu0 0.0
    %568 = vmatpush2.msra.mxu0 0.0
    %569 = vmatprep.subr.mxu0 0.0
    %570 = vmatpush2.msra.mxu0 0.0
    %571 = vmatprep.subr.mxu0 0.0
    %572 = vmatpush2.msra.mxu0 0.0
    %573 = vmatprep.subr.mxu0 0.0
    %574 = vmatpush2.msra.mxu0 0.0
    %575 = vmatprep.subr.mxu0 0.0
    %576 = vmatpush2.msra.mxu0 0.0
    %577 = vmatprep.subr.mxu0 0.0
    %578 = vmatpush2.msra.mxu0 0.0
    %579 = vmatprep.mubr.f32.mxu0 0.0
    %580 = vmatmul.mubr.f32.gmra.mxu0 %v510
    %v581 = vpop.f32.mrf.mxu0
    %v582 = vadd.f32 %v508, %v581
    %v583 = vpop.f32.mrf.mxu0
    %584 = vmatprep.mubr.f32.mxu0 0.0
    %585 = vmatmul.mubr.f32.gmra.mxu0 %v513
    %v586 = vpop.f32.mrf.mxu0
    %v587 = vadd.f32 %v508, %v586
    %v588 = vpop.f32.mrf.mxu0
    %589 = vdwg.mxu0
    %v590 = vadd.f32 %v40, %v582
    %v591 = vadd.f32 %v41, %v587
    %v592 = vsel %vm82, %v590, 0.0
    %593 = vadd.xlane.f32.xlu0 %v592
    %v594 = vpop.xlane.xlu0 %593
    %v595 = vsel %vm82, %v591, 0.0
    %596 = vadd.xlane.f32.xlu0 %v595
    %v597 = vpop.xlane.xlu0 %596
    %v598 = vrcp.pop 32.0
    %v599 = vmul.f32 %v594, %v598
    %v600 = vmul.f32 %v597, %v598
    %v601 = vsub.f32 %v590, %v599
    %v602 = vsub.f32 %v591, %v600
    %v603 = vmul.f32 %v601, %v601
    %v604 = vmul.f32 %v602, %v602
    %v605 = vsel %vm82, %v603, 0.0
    %606 = vadd.xlane.f32.xlu0 %v605
    %v607 = vpop.xlane.xlu0 %606
    %v608 = vsel %vm82, %v604, 0.0
    %609 = vadd.xlane.f32.xlu0 %v608
    %v610 = vpop.xlane.xlu0 %609
    %v611 = vmul.f32 %v607, %v598
    %v612 = vmul.f32 %v610, %v598
    %v613 = vadd.f32 %v611, 1e-05
    %v614 = vadd.f32 %v612, 1e-05
    %v615 = vrsqrt.pop %v613
    %v616 = vrsqrt.pop %v614
    %v617 = vmul.f32 %v601, %v615
    %v618 = vmul.f32 %v602, %v616
    %v619 = vlaneseq
    %v620 = vshrl.u32 %v619, 7
    %v621 = vsub.s32 0, %v620
    %v622 = vrot.slane %v64, %v621
    %v624 = vsel %vm82, %v617, 0
    %v627 = vsel %vm82, %v618, 0
    %629 = vmatprep.subr.mxu0 0.0
    %630 = vmatpush1.msra.mxu0 0.0
    %631 = vmatprep.subr.mxu0 0.0
    %632 = vmatpush1.msra.mxu0 0.0
    %633 = vmatprep.subr.mxu0 0.0
    %634 = vmatpush1.msra.mxu0 0.0
    %635 = vmatprep.subr.mxu0 0.0
    %636 = vmatpush1.msra.mxu0 0.0
    %637 = vmatprep.subr.mxu0 0.0
    %638 = vmatpush1.msra.mxu0 0.0
    %639 = vmatprep.subr.mxu0 0.0
    %640 = vmatpush1.msra.mxu0 0.0
    %641 = vmatprep.subr.mxu0 0.0
    %642 = vmatpush1.msra.mxu0 0.0
    %643 = vmatprep.subr.mxu0 0.0
    %644 = vmatpush1.msra.mxu0 0.0
    %645 = vmatprep.subr.mxu0 0.0
    %646 = vmatpush1.msra.mxu0 0.0
    %647 = vmatprep.subr.mxu0 0.0
    %648 = vmatpush1.msra.mxu0 0.0
    %649 = vmatprep.subr.mxu0 0.0
    %650 = vmatpush1.msra.mxu0 0.0
    %651 = vmatprep.subr.mxu0 0.0
    %652 = vmatpush1.msra.mxu0 0.0
    %653 = vmatprep.subr.mxu0 0.0
    %654 = vmatpush1.msra.mxu0 %v53
    %655 = vmatprep.subr.mxu0 0.0
    %656 = vmatpush1.msra.mxu0 %v52
    %657 = vmatprep.subr.mxu0 0.0
    %658 = vmatpush1.msra.mxu0 %v51
    %659 = vmatprep.subr.mxu0 0.0
    %660 = vmatpush1.msra.mxu0 %v50
    %661 = vmatprep.subr.mxu0 0.0
    %662 = vmatpush2.msra.mxu0 0.0
    %663 = vmatprep.subr.mxu0 0.0
    %664 = vmatpush2.msra.mxu0 0.0
    %665 = vmatprep.subr.mxu0 0.0
    %666 = vmatpush2.msra.mxu0 0.0
    %667 = vmatprep.subr.mxu0 0.0
    %668 = vmatpush2.msra.mxu0 0.0
    %669 = vmatprep.subr.mxu0 0.0
    %670 = vmatpush2.msra.mxu0 0.0
    %671 = vmatprep.subr.mxu0 0.0
    %672 = vmatpush2.msra.mxu0 0.0
    %673 = vmatprep.subr.mxu0 0.0
    %674 = vmatpush2.msra.mxu0 0.0
    %675 = vmatprep.subr.mxu0 0.0
    %676 = vmatpush2.msra.mxu0 0.0
    %677 = vmatprep.subr.mxu0 0.0
    %678 = vmatpush2.msra.mxu0 0.0
    %679 = vmatprep.subr.mxu0 0.0
    %680 = vmatpush2.msra.mxu0 0.0
    %681 = vmatprep.subr.mxu0 0.0
    %682 = vmatpush2.msra.mxu0 0.0
    %683 = vmatprep.subr.mxu0 0.0
    %684 = vmatpush2.msra.mxu0 0.0
    %685 = vmatprep.subr.mxu0 0.0
    %686 = vmatpush2.msra.mxu0 0.0
    %687 = vmatprep.subr.mxu0 0.0
    %688 = vmatpush2.msra.mxu0 0.0
    %689 = vmatprep.subr.mxu0 0.0
    %690 = vmatpush2.msra.mxu0 0.0
    %691 = vmatprep.subr.mxu0 0.0
    %692 = vmatpush2.msra.mxu0 0.0
    %693 = vmatprep.mubr.f32.mxu0 0.0
    %694 = vmatmul.mubr.f32.gmra.mxu0 %v624
    %v695 = vpop.f32.mrf.mxu0
    %v696 = vadd.f32 %v622, %v695
    %v697 = vpop.f32.mrf.mxu0
    %698 = vmatprep.mubr.f32.mxu0 0.0
    %699 = vmatmul.mubr.f32.gmra.mxu0 %v627
    %v700 = vpop.f32.mrf.mxu0
    %v701 = vadd.f32 %v622, %v700
    %v702 = vpop.f32.mrf.mxu0
    %703 = vdwg.mxu0
    %v704 = vmul.f32 %v696, 0.5
    %v705 = vmul.f32 %v701, 0.5
    %v706 = vmul.f32 %v696, 0.70710677
    %v707 = vmul.f32 %v701, 0.70710677
    %vm708 = vcmp.ge.f32.partialorder %v706, 0.0
    %vm709 = vcmp.ge.f32.partialorder %v707, 0.0
    %v710 = vsel %vm708, 1.0, -1.0
    %v711 = vsel %vm709, 1.0, -1.0
    %v712 = vand.u32 2147483647, %v706
    %v713 = vand.u32 2147483647, %v707
    %v714 = vmul.f32 %v712, 0.3275911
    %v715 = vmul.f32 %v713, 0.3275911
    %v716 = vadd.f32 %v714, 1.0
    %v717 = vadd.f32 %v715, 1.0
    %v718 = vrcp.pop %v716
    %v719 = vmul.f32 1.0, %v718
    %v720 = vrcp.pop %v717
    %v721 = vmul.f32 1.0, %v720
    %v722 = vmul.f32 %v719, 1.0614054
    %v723 = vmul.f32 %v721, 1.0614054
    %v724 = vadd.f32 %v722, -1.4531521
    %v725 = vadd.f32 %v723, -1.4531521
    %v726 = vmul.f32 %v724, %v719
    %v727 = vmul.f32 %v725, %v721
    %v728 = vadd.f32 %v726, 1.4214138
    %v729 = vadd.f32 %v727, 1.4214138
    %v730 = vmul.f32 %v728, %v719
    %v731 = vmul.f32 %v729, %v721
    %v732 = vadd.f32 %v730, -0.28449672
    %v733 = vadd.f32 %v731, -0.28449672
    %v734 = vmul.f32 %v732, %v719
    %v735 = vmul.f32 %v733, %v721
    %v736 = vadd.f32 %v734, 0.2548296
    %v737 = vadd.f32 %v735, 0.2548296
    %v738 = vmul.f32 %v736, %v719
    %v739 = vmul.f32 %v737, %v721
    %v740 = vsub.f32 0.0, %v712
    %v741 = vsub.f32 0.0, %v713
    %v742 = vmul.f32 %v740, %v712
    %v743 = vmul.f32 %v741, %v713
    %v744 = vmul.f32 %v742, 1.442695
    %v745 = vpow.pop %v744
    %v746 = vmul.f32 %v743, 1.442695
    %v747 = vpow.pop %v746
    %v748 = vmul.f32 %v738, %v745
    %v749 = vmul.f32 %v739, %v747
    %v750 = vsub.f32 1.0, %v748
    %v751 = vsub.f32 1.0, %v749
    %v752 = vmul.f32 %v710, %v750
    %v753 = vmul.f32 %v711, %v751
    %v754 = vadd.f32 %v752, 1.0
    %v755 = vadd.f32 %v753, 1.0
    %v756 = vmul.f32 %v704, %v754
    %v757 = vmul.f32 %v705, %v755
    %v758 = vlaneseq
    %v759 = vshrl.u32 %v758, 7
    %v760 = vsub.s32 0, %v759
    %v761 = vrot.slane %v65, %v760
    %v763 = vsel %vm325, %v756, 0
    %v766 = vsel %vm325, %v757, 0
    %768 = vmatprep.subr.mxu0 0.0
    %769 = vmatpush1.msra.mxu0 0.0
    %770 = vmatprep.subr.mxu0 0.0
    %771 = vmatpush1.msra.mxu0 0.0
    %772 = vmatprep.subr.mxu0 0.0
    %773 = vmatpush1.msra.mxu0 0.0
    %774 = vmatprep.subr.mxu0 0.0
    %775 = vmatpush1.msra.mxu0 0.0
    %776 = vmatprep.subr.mxu0 0.0
    %777 = vmatpush1.msra.mxu0 0.0
    %778 = vmatprep.subr.mxu0 0.0
    %779 = vmatpush1.msra.mxu0 0.0
    %780 = vmatprep.subr.mxu0 0.0
    %781 = vmatpush1.msra.mxu0 0.0
    %782 = vmatprep.subr.mxu0 0.0
    %783 = vmatpush1.msra.mxu0 0.0
    %784 = vmatprep.subr.mxu0 0.0
    %785 = vmatpush1.msra.mxu0 %v61
    %786 = vmatprep.subr.mxu0 0.0
    %787 = vmatpush1.msra.mxu0 %v60
    %788 = vmatprep.subr.mxu0 0.0
    %789 = vmatpush1.msra.mxu0 %v59
    %790 = vmatprep.subr.mxu0 0.0
    %791 = vmatpush1.msra.mxu0 %v58
    %792 = vmatprep.subr.mxu0 0.0
    %793 = vmatpush1.msra.mxu0 %v57
    %794 = vmatprep.subr.mxu0 0.0
    %795 = vmatpush1.msra.mxu0 %v56
    %796 = vmatprep.subr.mxu0 0.0
    %797 = vmatpush1.msra.mxu0 %v55
    %798 = vmatprep.subr.mxu0 0.0
    %799 = vmatpush1.msra.mxu0 %v54
    %800 = vmatprep.subr.mxu0 0.0
    %801 = vmatpush2.msra.mxu0 0.0
    %802 = vmatprep.subr.mxu0 0.0
    %803 = vmatpush2.msra.mxu0 0.0
    %804 = vmatprep.subr.mxu0 0.0
    %805 = vmatpush2.msra.mxu0 0.0
    %806 = vmatprep.subr.mxu0 0.0
    %807 = vmatpush2.msra.mxu0 0.0
    %808 = vmatprep.subr.mxu0 0.0
    %809 = vmatpush2.msra.mxu0 0.0
    %810 = vmatprep.subr.mxu0 0.0
    %811 = vmatpush2.msra.mxu0 0.0
    %812 = vmatprep.subr.mxu0 0.0
    %813 = vmatpush2.msra.mxu0 0.0
    %814 = vmatprep.subr.mxu0 0.0
    %815 = vmatpush2.msra.mxu0 0.0
    %816 = vmatprep.subr.mxu0 0.0
    %817 = vmatpush2.msra.mxu0 0.0
    %818 = vmatprep.subr.mxu0 0.0
    %819 = vmatpush2.msra.mxu0 0.0
    %820 = vmatprep.subr.mxu0 0.0
    %821 = vmatpush2.msra.mxu0 0.0
    %822 = vmatprep.subr.mxu0 0.0
    %823 = vmatpush2.msra.mxu0 0.0
    %824 = vmatprep.subr.mxu0 0.0
    %825 = vmatpush2.msra.mxu0 0.0
    %826 = vmatprep.subr.mxu0 0.0
    %827 = vmatpush2.msra.mxu0 0.0
    %828 = vmatprep.subr.mxu0 0.0
    %829 = vmatpush2.msra.mxu0 0.0
    %830 = vmatprep.subr.mxu0 0.0
    %831 = vmatpush2.msra.mxu0 0.0
    %832 = vmatprep.mubr.f32.mxu0 0.0
    %833 = vmatmul.mubr.f32.gmra.mxu0 %v763
    %v834 = vpop.f32.mrf.mxu0
    %v835 = vadd.f32 %v761, %v834
    %v836 = vpop.f32.mrf.mxu0
    %837 = vmatprep.mubr.f32.mxu0 0.0
    %838 = vmatmul.mubr.f32.gmra.mxu0 %v766
    %v839 = vpop.f32.mrf.mxu0
    %v840 = vadd.f32 %v761, %v839
    %v841 = vpop.f32.mrf.mxu0
    %842 = vdwg.mxu0
    %845 = vrot.lane.b32.xlu0 %v835, 64
    %v846 = vpop.permute.xlu0 %845
    %847 = vrot.lane.b32.xlu0 %v840, 64
    %v848 = vpop.permute.xlu0 %847
    %v851 = vadd.f32 %v696, %v846
    %v852 = vadd.f32 %v701, %v848
    %855 = vrot.lane.b32.xlu0 %v851, 64
    %v856 = vpop.permute.xlu0 %855
    %857 = vrot.lane.b32.xlu0 %v852, 64
    %v858 = vpop.permute.xlu0 %857
    %vm861 = vcmask 392192
    %v862 = vsel %vm861, %v856, 0.0
    %863 = vadd.xlane.f32.xlu0 %v862
    %v864 = vpop.xlane.xlu0 %863
    %v865 = vsel %vm861, %v858, 0.0
    %866 = vadd.xlane.f32.xlu0 %v865
    %v867 = vpop.xlane.xlu0 %866
    %v868 = vrcp.pop 48.0
    %v869 = vmul.f32 %v864, %v868
    %v870 = vmul.f32 %v867, %v868
    %v871 = vsub.f32 %v851, %v869
    %v872 = vsub.f32 %v852, %v870
    %v873 = vmul.f32 %v871, %v871
    %v874 = vmul.f32 %v872, %v872
    %877 = vrot.lane.b32.xlu0 %v873, 64
    %v878 = vpop.permute.xlu0 %877
    %879 = vrot.lane.b32.xlu0 %v874, 64
    %v880 = vpop.permute.xlu0 %879
    %v883 = vsel %vm861, %v878, 0.0
    %884 = vadd.xlane.f32.xlu0 %v883
    %v885 = vpop.xlane.xlu0 %884
    %v886 = vsel %vm861, %v880, 0.0
    %887 = vadd.xlane.f32.xlu0 %v886
    %v888 = vpop.xlane.xlu0 %887
    %v889 = vmul.f32 %v885, %v868
    %v890 = vmul.f32 %v888, %v868
    %v891 = vadd.f32 %v889, 1e-05
    %v892 = vadd.f32 %v890, 1e-05
    %v893 = vrsqrt.pop %v891
    %v894 = vrsqrt.pop %v892
    %v895 = vmul.f32 %v871, %v893
    %v896 = vmul.f32 %v872, %v894
    %v897 = vlaneseq
    %v898 = vshrl.u32 %v897, 7
    %v899 = vsub.s32 0, %v898
    %v900 = vrot.slane %v66, %v899
    %902 = vrot.lane.b32.xlu0 %v900, 64
    %v903 = vpop.permute.xlu0 %902
    %v905 = vmul.f32 %v895, %v903
    %v906 = vmul.f32 %v896, %v903
    %v907 = vlaneseq
    %v908 = vshrl.u32 %v907, 7
    %v909 = vsub.s32 0, %v908
    %v910 = vrot.slane %v67, %v909
    %912 = vrot.lane.b32.xlu0 %v910, 64
    %v913 = vpop.permute.xlu0 %912
    %v915 = vadd.f32 %v905, %v913
    %v916 = vadd.f32 %v906, %v913
    %919 = vrot.lane.b32.xlu0 %v915, 64
    %v920 = vpop.permute.xlu0 %919
    %921 = vrot.lane.b32.xlu0 %v916, 64
    %v922 = vpop.permute.xlu0 %921
    %925 = vst.msk [vmem:[#allocation7] sm:$0xff] %vm861, %v920
    %926 = vst.msk [vmem:[#allocation7 + $0x8] sm:$0xff] %vm861, %v922
    // Predicated region
    $region18: #{tpu_custom_call.1} parent=1 // pred_check
      _
    $region19: #{tpu_custom_call.1} parent=1 // pred_check_branch
      %928 = sbr.rel (0) target = $region21
    $region20: #{tpu_custom_call.1} parent=1 // pred_region
      %s930 = ssub.s32 256, 256
      %931 = vsyncadd [#allocation4], %s930
      %s932 = sshll.u32 [#allocation7], 4
      %s933 = int_to_ptr.vmem [resolvable:$true] %s932
      %938 = dma.vmem_to_hbm [thread:$0]  %s933, 256, %s2, [#allocation4], 128, 128, 8
    $region21: #{tpu_custom_call.1} parent=1 // pred_fallthru
      _
    // Predicated region
    $region22: #{tpu_custom_call.1} parent=1 // pred_check
      _
    $region23: #{tpu_custom_call.1} parent=1 // pred_check_branch
      %940 = sbr.rel (0) target = $region25
    $region24: #{tpu_custom_call.1} parent=1 // pred_region
      %941 = dma.done [#allocation4], 256
    $region25: #{tpu_custom_call.1} parent=1 // pred_fallthru
      _
    %942 = vsyncpa [#allocation3], 1
    %943 = vsyncpa [#allocation6], 1
    %944 = vsyncpa [#allocation4], 1

</llo_original>
